<compile_context>
chip_gen: v7x
topology: tpu7x:2x2x1
jax: 0.10.0
libtpu: 0.0.40
codegen_flags: <defaults>
</compile_context>

<pallas_src>
import jax
import jax.numpy as jnp
from jax.experimental import pallas as pl
from jax.experimental.pallas import tpu as pltpu


def xtoy_kernel(x_ref, mask_ref, w_ref, b_ref, out_ref,
                sum_x, sum_xm, sum_x2m, msum, mn, mx, z):
    k = pl.program_id(1)
    nk = pl.num_programs(1)
    dx = x_ref.shape[-1]

    @pl.when(k == 0)
    def _init():
        sum_x[...] = jnp.zeros_like(sum_x)
        sum_xm[...] = jnp.zeros_like(sum_xm)
        sum_x2m[...] = jnp.zeros_like(sum_x2m)
        msum[...] = jnp.zeros_like(msum)
        mn[...] = jnp.full_like(mn, jnp.inf)
        mx[...] = jnp.full_like(mx, -jnp.inf)

    X = x_ref[...]                        # (bs_t, n_t, dx)  f32
    mask = mask_ref[...]                  # (bs_t, n_t, 1)   f32
    pen = 100000.0 * (1.0 - mask)         # (bs_t, n_t, 1)   hoisted, used twice

    xm = X * mask                         # implicit lane-broadcast of mask
    sum_x[...] += jnp.sum(X, axis=1)              # unmasked sum (as in torch)
    sum_xm[...] += jnp.sum(xm, axis=1)
    sum_x2m[...] += jnp.sum(X * xm, axis=1)
    msum[...] += jnp.sum(mask, axis=1)            # (bs_t, 1) valid-node count
    mn[...] = jnp.minimum(mn[...], jnp.min(X + pen, axis=1))
    mx[...] = jnp.maximum(mx[...], jnp.max(X - pen, axis=1))

    @pl.when(k == nk - 1)
    def _finalize():
        ms = msum[...]                    # (bs_t, 1)
        inv = 1.0 / ms
        m = sum_x[...] * inv              # (bs_t, dx)
        var = (sum_x2m[...] - 2.0 * m * sum_xm[...] + m * m * ms) * inv
        z[:, 0 * dx:1 * dx] = m
        z[:, 1 * dx:2 * dx] = mn[...]
        z[:, 2 * dx:3 * dx] = mx[...]
        z[:, 3 * dx:4 * dx] = var
        out = jnp.dot(z[...], w_ref[...],
                      preferred_element_type=jnp.float32) + b_ref[...]
        out_ref[...] = out.astype(out_ref.dtype)


def _pick_tile(total, max_tile, align=8):
    """Largest tile <= max_tile dividing `total` and aligned to `align`."""
    if total <= max_tile:
        return total
    for t in range(max_tile, align - 1, -1):
        if total % t == 0 and t % align == 0:
            return t
    return total  # fall back to full extent (no tiling on this axis)


def xtoy(X, x_mask, W_t, b, *, max_bs_tile=8, max_n_tile=None,
         vmem_budget_bytes=12 * 1024 * 1024):
    """X: (bs, n, dx) f32; x_mask: (bs, n, 1) f32; W_t: (4*dx, dy); b: (dy,)."""
    bs, n, dx = X.shape
    dy = W_t.shape[1]
    b2 = b.reshape(1, dy).astype(jnp.float32)

    bs_tile = bs if bs <= max_bs_tile else _pick_tile(bs, max_bs_tile, align=1)

    # Double-buffered X + mask bytes per node-row for this batch tile.
    bytes_per_n = bs_tile * (dx + 1) * 4 * 2
    budget_tile = max(8, vmem_budget_bytes // max(bytes_per_n, 1))
    cap = int(budget_tile if max_n_tile is None else min(max_n_tile, budget_tile))
    n_tile = _pick_tile(n, cap)

    grid = (bs // bs_tile, n // n_tile)

    grid_spec = pltpu.PrefetchScalarGridSpec(
        num_scalar_prefetch=0,
        grid=grid,
        in_specs=[
            pl.BlockSpec((bs_tile, n_tile, dx), lambda bi, ki: (bi, ki, 0)),
            pl.BlockSpec((bs_tile, n_tile, 1), lambda bi, ki: (bi, ki, 0)),
            pl.BlockSpec((4 * dx, dy), lambda bi, ki: (0, 0)),
            pl.BlockSpec((1, dy), lambda bi, ki: (0, 0)),
        ],
        out_specs=pl.BlockSpec((bs_tile, dy), lambda bi, ki: (bi, 0)),
        scratch_shapes=[
            pltpu.VMEM((bs_tile, dx), jnp.float32),      # sum_x
            pltpu.VMEM((bs_tile, dx), jnp.float32),      # sum_xm
            pltpu.VMEM((bs_tile, dx), jnp.float32),      # sum_x2m
            pltpu.VMEM((bs_tile, 1), jnp.float32),       # msum
            pltpu.VMEM((bs_tile, dx), jnp.float32),      # running min
            pltpu.VMEM((bs_tile, dx), jnp.float32),      # running max
            pltpu.VMEM((bs_tile, 4 * dx), jnp.float32),  # fused z
        ],
    )

    return pl.pallas_call(
        xtoy_kernel,
        out_shape=jax.ShapeDtypeStruct((bs, dy), jnp.float32),
        grid_spec=grid_spec,
        compiler_params=pltpu.CompilerParams(
            dimension_semantics=("parallel", "arbitrary")),
    )(X, x_mask, W_t, b2)


def xtoy_ref(X, x_mask, W_t, b):
    """Pure-JAX reference mirroring the PyTorch forward."""
    mask_e = jnp.broadcast_to(x_mask, X.shape)
    float_imask = 1.0 - mask_e
    mask_sum = jnp.sum(mask_e, axis=1)
    m = jnp.sum(X, axis=1) / mask_sum
    mi = jnp.min(X + 100000.0 * float_imask, axis=1)
    ma = jnp.max(X - 100000.0 * float_imask, axis=1)
    std = jnp.sum((X - m[:, None, :]) ** 2 * mask_e, axis=1) / mask_sum
    z = jnp.concatenate((m, mi, ma, std), axis=-1)
    return z @ W_t + b


if __name__ == "__main__":
    bs, n, dx, dy = 2, 64, 32, 16

    key = jax.random.PRNGKey(0)
    kx, kw, kb = jax.random.split(key, 3)

    X = jax.random.normal(kx, (bs, n, dx), dtype=jnp.float32)

    # Boolean-style node mask: first `valid[i]` nodes are valid for batch i.
    valid = jnp.array([50, 23], dtype=jnp.int32)
    node_idx = jnp.arange(n)[None, :]                                    # (1, n)
    x_mask = (node_idx < valid[:, None]).astype(jnp.float32)[..., None]  # (bs, n, 1)

    # nn.Linear(4*dx, dy): weight (dy, 4*dx), bias (dy,) — deterministic init.
    bound = 1.0 / jnp.sqrt(4.0 * dx)
    W = jax.random.uniform(kw, (dy, 4 * dx), minval=-bound, maxval=bound,
                           dtype=jnp.float32)
    b = jax.random.uniform(kb, (dy,), minval=-bound, maxval=bound,
                           dtype=jnp.float32)
    W_t = W.T  # (4*dx, dy) so the kernel computes z @ W_t + b

    # max_n_tile=32 -> 2 node tiles: exercises the streaming accumulator path.
    out = xtoy(X, x_mask, W_t, b, max_n_tile=32)
    out = jax.block_until_ready(out)

    ref = xtoy_ref(X, x_mask, W_t, b)
    assert out.shape == (bs, dy)
    assert jnp.allclose(out, ref, atol=1e-4, rtol=1e-4), "mismatch vs reference"

    print("KERNEL_OK")
</pallas_src>

<mosaic_0001>
module attributes {stable_mosaic.version = 11 : i64} {
  func.func @xtoy_kernel(%arg0: i32, %arg1: i32, %arg2: memref<2x32x32xf32, #tpu.memory_space<vmem>>, %arg3: memref<2x32x1xf32, #tpu.memory_space<vmem>>, %arg4: memref<128x16xf32, #tpu.memory_space<vmem>>, %arg5: memref<1x16xf32, #tpu.memory_space<vmem>>, %arg6: memref<2x16xf32, #tpu.memory_space<vmem>>, %arg7: memref<2x32xf32, #tpu.memory_space<vmem>>, %arg8: memref<2x32xf32, #tpu.memory_space<vmem>>, %arg9: memref<2x32xf32, #tpu.memory_space<vmem>>, %arg10: memref<2x1xf32, #tpu.memory_space<vmem>>, %arg11: memref<2x32xf32, #tpu.memory_space<vmem>>, %arg12: memref<2x32xf32, #tpu.memory_space<vmem>>, %arg13: memref<2x128xf32, #tpu.memory_space<vmem>>) attributes {dimension_semantics = [#tpu.dimension_semantics<parallel>, #tpu.dimension_semantics<arbitrary>], iteration_bounds = array<i64: 1, 2>, scalar_prefetch = 0 : i64, scratch_operands = 7 : i64, tpu.core_type = #tpu.core_type<tc>, window_params = [{transform_indices = @transform_0, window_bounds = array<i64: 2, 32, 32>}, {transform_indices = @transform_1, window_bounds = array<i64: 2, 32, 1>}, {pipeline_mode = #tpu.pipeline_mode<synchronous>, transform_indices = @transform_2, window_bounds = array<i64: 128, 16>}, {pipeline_mode = #tpu.pipeline_mode<synchronous>, transform_indices = @transform_3, window_bounds = array<i64: 1, 16>}, {transform_indices = @transform_4, window_bounds = array<i64: 2, 16>}]} {
    %c0_i32 = arith.constant 0 : i32
    %0 = arith.cmpi eq, %arg1, %c0_i32 : i32
    %1 = arith.extui %0 : i1 to i32
    %c0_i32_0 = arith.constant 0 : i32
    %2 = arith.cmpi ne, %1, %c0_i32_0 : i32
    scf.if %2 {
      %cst_38 = arith.constant 0.000000e+00 : f32
      %43 = vector.broadcast %cst_38 : f32 to vector<2x32xf32>
      %c0_39 = arith.constant 0 : index
      %c0_40 = arith.constant 0 : index
      %44 = vector.load %arg7[%c0_39, %c0_40] : memref<2x32xf32, #tpu.memory_space<vmem>>, vector<2x32xf32>
      tpu.vector_store %arg7[%c0_39, %c0_40], %43 {strides = array<i32>} : memref<2x32xf32, #tpu.memory_space<vmem>>, vector<2x32xf32>,
      %cst_41 = arith.constant 0.000000e+00 : f32
      %45 = vector.broadcast %cst_41 : f32 to vector<2x32xf32>
      %c0_42 = arith.constant 0 : index
      %c0_43 = arith.constant 0 : index
      %46 = vector.load %arg8[%c0_42, %c0_43] : memref<2x32xf32, #tpu.memory_space<vmem>>, vector<2x32xf32>
      tpu.vector_store %arg8[%c0_42, %c0_43], %45 {strides = array<i32>} : memref<2x32xf32, #tpu.memory_space<vmem>>, vector<2x32xf32>,
      %cst_44 = arith.constant 0.000000e+00 : f32
      %47 = vector.broadcast %cst_44 : f32 to vector<2x32xf32>
      %c0_45 = arith.constant 0 : index
      %c0_46 = arith.constant 0 : index
      %48 = vector.load %arg9[%c0_45, %c0_46] : memref<2x32xf32, #tpu.memory_space<vmem>>, vector<2x32xf32>
      tpu.vector_store %arg9[%c0_45, %c0_46], %47 {strides = array<i32>} : memref<2x32xf32, #tpu.memory_space<vmem>>, vector<2x32xf32>,
      %cst_47 = arith.constant 0.000000e+00 : f32
      %49 = vector.broadcast %cst_47 : f32 to vector<2x1xf32>
      %c0_48 = arith.constant 0 : index
      %c0_49 = arith.constant 0 : index
      %50 = vector.load %arg10[%c0_48, %c0_49] : memref<2x1xf32, #tpu.memory_space<vmem>>, vector<2x1xf32>
      tpu.vector_store %arg10[%c0_48, %c0_49], %49 {strides = array<i32>} : memref<2x1xf32, #tpu.memory_space<vmem>>, vector<2x1xf32>,
      %cst_50 = arith.constant 0x7F800000 : f32
      %51 = vector.broadcast %cst_50 : f32 to vector<2x32xf32>
      %c0_51 = arith.constant 0 : index
      %c0_52 = arith.constant 0 : index
      %52 = vector.load %arg11[%c0_51, %c0_52] : memref<2x32xf32, #tpu.memory_space<vmem>>, vector<2x32xf32>
      tpu.vector_store %arg11[%c0_51, %c0_52], %51 {strides = array<i32>} : memref<2x32xf32, #tpu.memory_space<vmem>>, vector<2x32xf32>,
      %cst_53 = arith.constant 0xFF800000 : f32
      %53 = vector.broadcast %cst_53 : f32 to vector<2x32xf32>
      %c0_54 = arith.constant 0 : index
      %c0_55 = arith.constant 0 : index
      %54 = vector.load %arg12[%c0_54, %c0_55] : memref<2x32xf32, #tpu.memory_space<vmem>>, vector<2x32xf32>
      tpu.vector_store %arg12[%c0_54, %c0_55], %53 {strides = array<i32>} : memref<2x32xf32, #tpu.memory_space<vmem>>, vector<2x32xf32>,
    } else {
    }
    %c0 = arith.constant 0 : index
    %c0_1 = arith.constant 0 : index
    %c0_2 = arith.constant 0 : index
    %3 = vector.load %arg2[%c0, %c0_1, %c0_2] : memref<2x32x32xf32, #tpu.memory_space<vmem>>, vector<2x32x32xf32>
    %c0_3 = arith.constant 0 : index
    %c0_4 = arith.constant 0 : index
    %c0_5 = arith.constant 0 : index
    %4 = vector.load %arg3[%c0_3, %c0_4, %c0_5] : memref<2x32x1xf32, #tpu.memory_space<vmem>>, vector<2x32x1xf32>
    %cst = arith.constant 1.000000e+00 : f32
    %5 = vector.broadcast %cst : f32 to vector<2x32x1xf32>
    %6 = arith.subf %5, %4 : vector<2x32x1xf32>
    %cst_6 = arith.constant 1.000000e+05 : f32
    %7 = vector.broadcast %cst_6 : f32 to vector<2x32x1xf32>
    %8 = arith.mulf %7, %6 : vector<2x32x1xf32>
    %9 = vector.broadcast %4 : vector<2x32x1xf32> to vector<2x32x32xf32>
    %10 = arith.mulf %3, %9 : vector<2x32x32xf32>
    %c0_7 = arith.constant 0 : index
    %c0_8 = arith.constant 0 : index
    %11 = vector.load %arg7[%c0_7, %c0_8] : memref<2x32xf32, #tpu.memory_space<vmem>>, vector<2x32xf32>
    %cst_9 = arith.constant dense<0.000000e+00> : vector<2x32xf32>
    %12 = vector.multi_reduction <add>, %3, %cst_9 [1] : vector<2x32x32xf32> to vector<2x32xf32>
    %13 = arith.addf %11, %12 : vector<2x32xf32>
    %c0_10 = arith.constant 0 : index
    %c0_11 = arith.constant 0 : index
    %14 = vector.load %arg7[%c0_10, %c0_11] : memref<2x32xf32, #tpu.memory_space<vmem>>, vector<2x32xf32>
    tpu.vector_store %arg7[%c0_10, %c0_11], %13 {strides = array<i32>} : memref<2x32xf32, #tpu.memory_space<vmem>>, vector<2x32xf32>,
    %c0_12 = arith.constant 0 : index
    %c0_13 = arith.constant 0 : index
    %15 = vector.load %arg8[%c0_12, %c0_13] : memref<2x32xf32, #tpu.memory_space<vmem>>, vector<2x32xf32>
    %cst_14 = arith.constant dense<0.000000e+00> : vector<2x32xf32>
    %16 = vector.multi_reduction <add>, %10, %cst_14 [1] : vector<2x32x32xf32> to vector<2x32xf32>
    %17 = arith.addf %15, %16 : vector<2x32xf32>
    %c0_15 = arith.constant 0 : index
    %c0_16 = arith.constant 0 : index
    %18 = vector.load %arg8[%c0_15, %c0_16] : memref<2x32xf32, #tpu.memory_space<vmem>>, vector<2x32xf32>
    tpu.vector_store %arg8[%c0_15, %c0_16], %17 {strides = array<i32>} : memref<2x32xf32, #tpu.memory_space<vmem>>, vector<2x32xf32>,
    %c0_17 = arith.constant 0 : index
    %c0_18 = arith.constant 0 : index
    %19 = vector.load %arg9[%c0_17, %c0_18] : memref<2x32xf32, #tpu.memory_space<vmem>>, vector<2x32xf32>
    %20 = arith.mulf %3, %10 : vector<2x32x32xf32>
    %cst_19 = arith.constant dense<0.000000e+00> : vector<2x32xf32>
    %21 = vector.multi_reduction <add>, %20, %cst_19 [1] : vector<2x32x32xf32> to vector<2x32xf32>
    %22 = arith.addf %19, %21 : vector<2x32xf32>
    %c0_20 = arith.constant 0 : index
    %c0_21 = arith.constant 0 : index
    %23 = vector.load %arg9[%c0_20, %c0_21] : memref<2x32xf32, #tpu.memory_space<vmem>>, vector<2x32xf32>
    tpu.vector_store %arg9[%c0_20, %c0_21], %22 {strides = array<i32>} : memref<2x32xf32, #tpu.memory_space<vmem>>, vector<2x32xf32>,
    %c0_22 = arith.constant 0 : index
    %c0_23 = arith.constant 0 : index
    %24 = vector.load %arg10[%c0_22, %c0_23] : memref<2x1xf32, #tpu.memory_space<vmem>>, vector<2x1xf32>
    %cst_24 = arith.constant dense<0.000000e+00> : vector<2x1xf32>
    %25 = vector.multi_reduction <add>, %4, %cst_24 [1] : vector<2x32x1xf32> to vector<2x1xf32>
    %26 = arith.addf %24, %25 : vector<2x1xf32>
    %c0_25 = arith.constant 0 : index
    %c0_26 = arith.constant 0 : index
    %27 = vector.load %arg10[%c0_25, %c0_26] : memref<2x1xf32, #tpu.memory_space<vmem>>, vector<2x1xf32>
    tpu.vector_store %arg10[%c0_25, %c0_26], %26 {strides = array<i32>} : memref<2x1xf32, #tpu.memory_space<vmem>>, vector<2x1xf32>,
    %c0_27 = arith.constant 0 : index
    %c0_28 = arith.constant 0 : index
    %28 = vector.load %arg11[%c0_27, %c0_28] : memref<2x32xf32, #tpu.memory_space<vmem>>, vector<2x32xf32>
    %29 = vector.broadcast %8 : vector<2x32x1xf32> to vector<2x32x32xf32>
    %30 = arith.addf %3, %29 : vector<2x32x32xf32>
    %cst_29 = arith.constant dense<0x7F800000> : vector<2x32xf32>
    %31 = vector.multi_reduction <minimumf>, %30, %cst_29 [1] : vector<2x32x32xf32> to vector<2x32xf32>
    %32 = arith.minimumf %28, %31 : vector<2x32xf32>
    %c0_30 = arith.constant 0 : index
    %c0_31 = arith.constant 0 : index
    %33 = vector.load %arg11[%c0_30, %c0_31] : memref<2x32xf32, #tpu.memory_space<vmem>>, vector<2x32xf32>
    tpu.vector_store %arg11[%c0_30, %c0_31], %32 {strides = array<i32>} : memref<2x32xf32, #tpu.memory_space<vmem>>, vector<2x32xf32>,
    %c0_32 = arith.constant 0 : index
    %c0_33 = arith.constant 0 : index
    %34 = vector.load %arg12[%c0_32, %c0_33] : memref<2x32xf32, #tpu.memory_space<vmem>>, vector<2x32xf32>
    %35 = vector.broadcast %8 : vector<2x32x1xf32> to vector<2x32x32xf32>
    %36 = arith.subf %3, %35 : vector<2x32x32xf32>
    %cst_34 = arith.constant dense<0xFF800000> : vector<2x32xf32>
    %37 = vector.multi_reduction <maximumf>, %36, %cst_34 [1] : vector<2x32x32xf32> to vector<2x32xf32>
    %38 = arith.maximumf %34, %37 : vector<2x32xf32>
    %c0_35 = arith.constant 0 : index
    %c0_36 = arith.constant 0 : index
    %39 = vector.load %arg12[%c0_35, %c0_36] : memref<2x32xf32, #tpu.memory_space<vmem>>, vector<2x32xf32>
    tpu.vector_store %arg12[%c0_35, %c0_36], %38 {strides = array<i32>} : memref<2x32xf32, #tpu.memory_space<vmem>>, vector<2x32xf32>,
    %c1_i32 = arith.constant 1 : i32
    %40 = arith.cmpi eq, %arg1, %c1_i32 : i32
    %41 = arith.extui %40 : i1 to i32
    %c0_i32_37 = arith.constant 0 : i32
    %42 = arith.cmpi ne, %41, %c0_i32_37 : i32
    scf.if %42 {
      %c0_38 = arith.constant 0 : index
      %c0_39 = arith.constant 0 : index
      %43 = vector.load %arg10[%c0_38, %c0_39] : memref<2x1xf32, #tpu.memory_space<vmem>>, vector<2x1xf32>
      %cst_40 = arith.constant 1.000000e+00 : f32
      %44 = vector.broadcast %cst_40 : f32 to vector<2x1xf32>
      %45 = arith.divf %44, %43 : vector<2x1xf32>
      %c0_41 = arith.constant 0 : index
      %c0_42 = arith.constant 0 : index
      %46 = vector.load %arg7[%c0_41, %c0_42] : memref<2x32xf32, #tpu.memory_space<vmem>>, vector<2x32xf32>
      %47 = vector.broadcast %45 : vector<2x1xf32> to vector<2x32xf32>
      %48 = arith.mulf %46, %47 : vector<2x32xf32>
      %c0_43 = arith.constant 0 : index
      %c0_44 = arith.constant 0 : index
      %49 = vector.load %arg9[%c0_43, %c0_44] : memref<2x32xf32, #tpu.memory_space<vmem>>, vector<2x32xf32>
      %cst_45 = arith.constant 2.000000e+00 : f32
      %50 = vector.broadcast %cst_45 : f32 to vector<2x32xf32>
      %51 = arith.mulf %50, %48 : vector<2x32xf32>
      %c0_46 = arith.constant 0 : index
      %c0_47 = arith.constant 0 : index
      %52 = vector.load %arg8[%c0_46, %c0_47] : memref<2x32xf32, #tpu.memory_space<vmem>>, vector<2x32xf32>
      %53 = arith.mulf %51, %52 : vector<2x32xf32>
      %54 = arith.subf %49, %53 : vector<2x32xf32>
      %55 = arith.mulf %48, %48 : vector<2x32xf32>
      %56 = vector.broadcast %43 : vector<2x1xf32> to vector<2x32xf32>
      %57 = arith.mulf %55, %56 : vector<2x32xf32>
      %58 = arith.addf %54, %57 : vector<2x32xf32>
      %59 = vector.broadcast %45 : vector<2x1xf32> to vector<2x32xf32>
      %60 = arith.mulf %58, %59 : vector<2x32xf32>
      %c0_48 = arith.constant 0 : index
      %c0_49 = arith.constant 0 : index
      %61 = vector.load %arg13[%c0_48, %c0_49] : memref<2x128xf32, #tpu.memory_space<vmem>>, vector<2x32xf32>
      tpu.vector_store %arg13[%c0_48, %c0_49], %48 {strides = array<i32>} : memref<2x128xf32, #tpu.memory_space<vmem>>, vector<2x32xf32>,
      %c0_50 = arith.constant 0 : index
      %c0_51 = arith.constant 0 : index
      %62 = vector.load %arg11[%c0_50, %c0_51] : memref<2x32xf32, #tpu.memory_space<vmem>>, vector<2x32xf32>
      %c0_52 = arith.constant 0 : index
      %c32 = arith.constant 32 : index
      %63 = vector.load %arg13[%c0_52, %c32] : memref<2x128xf32, #tpu.memory_space<vmem>>, vector<2x32xf32>
      tpu.vector_store %arg13[%c0_52, %c32], %62 {strides = array<i32>} : memref<2x128xf32, #tpu.memory_space<vmem>>, vector<2x32xf32>,
      %c0_53 = arith.constant 0 : index
      %c0_54 = arith.constant 0 : index
      %64 = vector.load %arg12[%c0_53, %c0_54] : memref<2x32xf32, #tpu.memory_space<vmem>>, vector<2x32xf32>
      %c0_55 = arith.constant 0 : index
      %c64 = arith.constant 64 : index
      %65 = vector.load %arg13[%c0_55, %c64] : memref<2x128xf32, #tpu.memory_space<vmem>>, vector<2x32xf32>
      tpu.vector_store %arg13[%c0_55, %c64], %64 {strides = array<i32>} : memref<2x128xf32, #tpu.memory_space<vmem>>, vector<2x32xf32>,
      %c0_56 = arith.constant 0 : index
      %c96 = arith.constant 96 : index
      %66 = vector.load %arg13[%c0_56, %c96] : memref<2x128xf32, #tpu.memory_space<vmem>>, vector<2x32xf32>
      tpu.vector_store %arg13[%c0_56, %c96], %60 {strides = array<i32>} : memref<2x128xf32, #tpu.memory_space<vmem>>, vector<2x32xf32>,
      %c0_57 = arith.constant 0 : index
      %c0_58 = arith.constant 0 : index
      %67 = vector.load %arg13[%c0_57, %c0_58] : memref<2x128xf32, #tpu.memory_space<vmem>>, vector<2x128xf32>
      %c0_59 = arith.constant 0 : index
      %c0_60 = arith.constant 0 : index
      %68 = vector.load %arg4[%c0_59, %c0_60] : memref<128x16xf32, #tpu.memory_space<vmem>>, vector<128x16xf32>
      %cst_61 = arith.constant dense<0.000000e+00> : vector<2x16xf32>
      %69 = tpu.matmul %67, %68, %cst_61 {dimension_numbers = #tpu.dot_dimension_numbers<[1], [0], [0], [1], [0, 0, 1, 1], [], []>} : vector<2x128xf32>, vector<128x16xf32>, vector<2x16xf32> -> vector<2x16xf32>
      %c0_62 = arith.constant 0 : index
      %c0_63 = arith.constant 0 : index
      %70 = vector.load %arg5[%c0_62, %c0_63] : memref<1x16xf32, #tpu.memory_space<vmem>>, vector<1x16xf32>
      %71 = vector.broadcast %70 : vector<1x16xf32> to vector<2x16xf32>
      %72 = arith.addf %69, %71 : vector<2x16xf32>
      %c0_64 = arith.constant 0 : index
      %c0_65 = arith.constant 0 : index
      %73 = vector.load %arg6[%c0_64, %c0_65] : memref<2x16xf32, #tpu.memory_space<vmem>>, vector<2x16xf32>
      tpu.vector_store %arg6[%c0_64, %c0_65], %72 {strides = array<i32>} : memref<2x16xf32, #tpu.memory_space<vmem>>, vector<2x16xf32>,
    } else {
    }
    return
  }
  func.func @transform_0(%arg0: i32, %arg1: i32) -> (i32, i32, i32) {
    %c0_i32 = arith.constant 0 : i32
    %c0_i32_0 = arith.constant 0 : i32
    return %arg0, %arg1, %c0_i32 : i32, i32, i32
  }
  func.func @transform_1(%arg0: i32, %arg1: i32) -> (i32, i32, i32) {
    %c0_i32 = arith.constant 0 : i32
    %c0_i32_0 = arith.constant 0 : i32
    return %arg0, %arg1, %c0_i32 : i32, i32, i32
  }
  func.func @transform_2(%arg0: i32, %arg1: i32) -> (i32, i32) {
    %c0_i32 = arith.constant 0 : i32
    %c0_i32_0 = arith.constant 0 : i32
    %c0_i32_1 = arith.constant 0 : i32
    return %c0_i32, %c0_i32_0 : i32, i32
  }
  func.func @transform_3(%arg0: i32, %arg1: i32) -> (i32, i32) {
    %c0_i32 = arith.constant 0 : i32
    %c0_i32_0 = arith.constant 0 : i32
    %c0_i32_1 = arith.constant 0 : i32
    return %c0_i32, %c0_i32_0 : i32, i32
  }
  func.func @transform_4(%arg0: i32, %arg1: i32) -> (i32, i32) {
    %c0_i32 = arith.constant 0 : i32
    %c0_i32_0 = arith.constant 0 : i32
    return %arg0, %c0_i32 : i32, i32
  }
}

</mosaic_0001>

<llo_original>
// kernel: tpu_custom_call.1
$region0: #{tpu_custom_call.1}
  #allocation0 [shape = 'u32[]', space=smem, size = 0x4, offset = 0x4, fixed_abs, tag = 'smem constant byte address 0x4 - core index']
  #allocation1 [shape = 'u32[144,128]{1,0:T(1,128)}', space=vmem, size = 0x12000, scoped, tag = 'internal scratch']
  #allocation2 [shape = 'f32[2,32]{1,0:T(2,128)}', space=vmem, size = 0x400, scoped, tag = 'scratch operand']
  #allocation3 [shape = 'f32[2,32]{1,0:T(2,128)}', space=vmem, size = 0x400, scoped, tag = 'scratch operand']
  #allocation4 [shape = 'f32[2,32]{1,0:T(2,128)}', space=vmem, size = 0x400, scoped, tag = 'scratch operand']
  #allocation5 [shape = 'f32[2,1]{1,0:T(2,128)}', space=vmem, size = 0x400, scoped, tag = 'scratch operand']
  #allocation6 [shape = 'f32[2,32]{1,0:T(2,128)}', space=vmem, size = 0x400, scoped, tag = 'scratch operand']
  #allocation7 [shape = 'f32[2,32]{1,0:T(2,128)}', space=vmem, size = 0x400, scoped, tag = 'scratch operand']
  #allocation8 [shape = 'f32[2,128]{1,0:T(2,128)}', space=vmem, size = 0x400, scoped, tag = 'scratch operand']
  %s0 = inlined_call_operand.vmem [shape: f32[2,64,32], index: 0, kind: input, shape index: {}]
  %s1 = inlined_call_operand.vmem [shape: f32[2,64,1], index: 1, kind: input, shape index: {}]
  %s2 = inlined_call_operand.vmem [shape: f32[128,16], index: 2, kind: input, shape index: {}]
  %s3 = inlined_call_operand.vmem [shape: f32[1,16], index: 3, kind: input, shape index: {}]
  %s4 = inlined_call_operand.hbm [shape: f32[2,16], index: 4, kind: output, shape index: {}]
  %s5 = sld [smem:[#allocation0]]
  $region133: #{tpu_custom_call.1} parent=0
    _
  %s7 = ssub.s32 1, %s5
  %s8 = scalar_select 0, %s7, %s5
  $region1: #{tpu_custom_call.1} parent=0
    #allocation9 [shape = 'u8[65536]{0}', space=vmem, size = 0x10000, scoped, tag = 'input window, operand 0']
    #allocation10 [shape = 'u8[65536]{0}', space=vmem, size = 0x10000, scoped, tag = 'input window, operand 1']
    #allocation11 [shape = 'u8[1024]{0}', space=vmem, size = 0x400, scoped, tag = 'output window, operand 0, single buffered']
    #allocation12 [shape = 's32[2]{0}', space=sflag, size = 0x8, scoped, tag = 'scoped memory for tpu_custom_call.1']
    %9 = vsyncpa [#allocation12], 0
    loop: start=0, step=1, limit=4
    $region2: #{tpu_custom_call.1} parent=1 // loop_pre_header
      _
    $region3: #{tpu_custom_call.1} parent=1 // loop_header
      %s11 = sphi 0, %s15
      %p12 = scmp.ge.s32.totalorder %s11, 4
      %s18 = sphi 0, %s30
      %s19 = sphi 0, %s26
      %s20 = sphi 0, %s18
      %s21 = sphi 0, %s19
      %s22 = sphi 0, %s20
      %s23 = sphi 0, %s21
      %s35 = sphi 0, %s37
      %s38 = sphi 0, %s35
      %s39 = sphi 0, %s38
      %s55 = sphi 0, %s39
      %s63 = sphi 0, %s65
      %s66 = sphi 0, %s63
      %s67 = sphi 0, %s66
      %s83 = sphi 0, %s67
      %s87 = sphi 0, %s87
      %s89 = sphi 0, %s87
      %s90 = sphi 0, %s89
      %s104 = sphi 0, %s90
      %s108 = sphi 0, %s108
      %s110 = sphi 0, %s108
      %s111 = sphi 0, %s110
      %s125 = sphi 0, %s111
      %s131 = sphi 0, %s133
      %s134 = sphi 0, %s131
      %s135 = sphi 0, %s134
      %s151 = sphi 0, %s135
    $region4: #{tpu_custom_call.1} parent=1 // loop_header_branch
      %14 = sbr.rel (%p12) target = $region8
    $region5: #{tpu_custom_call.1} parent=1 // loop_body
      %s16 = ssub.s32 %s11, 1
      %s17 = ssub.s32 %s11, 2
      %s24 = sadd.s32 1, %s19
      %p25 = scmp.ge.s32.totalorder %s24, 2
      %s26 = scalar_select %p25, 0, %s24
      %s27 = sadd.s32 1, %s18
      %s28 = scalar_select %p25, %s27, %s18
      %p29 = scmp.ge.s32.totalorder %s28, 1
      %s30 = scalar_select %p29, 0, %s28
      %s31 = ssub.s32 %s18, %s30
      %s32 = ssub.s32 %s19, %s26
      %s33 = sor.u32 %s31, %s32
      %p34 = scmp.eq.s32.totalorder %s33, 0
      %s36 = sadd.s32 %s35, 1
      %s37 = scalar_select %p34, %s35, %s36
      %p40 = pneg %p34
      %p41 = scmp.eq.s32.totalorder %s11, 1
      %p42 = por %p40, %p41
      %p43 = scmp.ne.s32.totalorder %s35, %s38
      %p44 = scmp.eq.s32.totalorder %s11, 0
      %p45 = por %p43, %p44
      %p46 = scmp.ne.s32.totalorder %s35, %s38
      %p47 = scmp.eq.s32.totalorder %s16, 1
      %p48 = por %p46, %p47
      %p49 = scmp.ne.s32.totalorder %s38, %s39
      %p50 = scmp.eq.s32.totalorder %s16, 0
      %p51 = por %p49, %p50
      %p52 = scmp.ne.s32.totalorder %s38, %s39
      %p53 = scmp.eq.s32.totalorder %s17, 1
      %p54 = por %p52, %p53
      %p56 = scmp.ne.s32.totalorder %s39, %s55
      %p57 = scmp.eq.s32.totalorder %s17, 0
      %p58 = por %p56, %p57
      %s59 = ssub.s32 %s18, %s30
      %s60 = ssub.s32 %s19, %s26
      %s61 = sor.u32 %s59, %s60
      %p62 = scmp.eq.s32.totalorder %s61, 0
      %s64 = sadd.s32 %s63, 1
      %s65 = scalar_select %p62, %s63, %s64
      %p68 = pneg %p62
      %p69 = scmp.eq.s32.totalorder %s11, 1
      %p70 = por %p68, %p69
      %p71 = scmp.ne.s32.totalorder %s63, %s66
      %p72 = scmp.eq.s32.totalorder %s11, 0
      %p73 = por %p71, %p72
      %p74 = scmp.ne.s32.totalorder %s63, %s66
      %p75 = scmp.eq.s32.totalorder %s16, 1
      %p76 = por %p74, %p75
      %p77 = scmp.ne.s32.totalorder %s66, %s67
      %p78 = scmp.eq.s32.totalorder %s16, 0
      %p79 = por %p77, %p78
      %p80 = scmp.ne.s32.totalorder %s66, %s67
      %p81 = scmp.eq.s32.totalorder %s17, 1
      %p82 = por %p80, %p81
      %p84 = scmp.ne.s32.totalorder %s67, %s83
      %p85 = scmp.eq.s32.totalorder %s17, 0
      %p86 = por %p84, %p85
      %s88 = sadd.s32 %s87, 1
      %p91 = scmp.eq.s32.totalorder %s11, 1
      %p92 = scmp.ne.s32.totalorder %s87, %s89
      %p93 = scmp.eq.s32.totalorder %s11, 0
      %p94 = por %p92, %p93
      %p95 = scmp.ne.s32.totalorder %s87, %s89
      %p96 = scmp.eq.s32.totalorder %s16, 1
      %p97 = por %p95, %p96
      %p98 = scmp.ne.s32.totalorder %s89, %s90
      %p99 = scmp.eq.s32.totalorder %s16, 0
      %p100 = por %p98, %p99
      %p101 = scmp.ne.s32.totalorder %s89, %s90
      %p102 = scmp.eq.s32.totalorder %s17, 1
      %p103 = por %p101, %p102
      %p105 = scmp.ne.s32.totalorder %s90, %s104
      %p106 = scmp.eq.s32.totalorder %s17, 0
      %p107 = por %p105, %p106
      %s109 = sadd.s32 %s108, 1
      %p112 = scmp.eq.s32.totalorder %s11, 1
      %p113 = scmp.ne.s32.totalorder %s108, %s110
      %p114 = scmp.eq.s32.totalorder %s11, 0
      %p115 = por %p113, %p114
      %p116 = scmp.ne.s32.totalorder %s108, %s110
      %p117 = scmp.eq.s32.totalorder %s16, 1
      %p118 = por %p116, %p117
      %p119 = scmp.ne.s32.totalorder %s110, %s111
      %p120 = scmp.eq.s32.totalorder %s16, 0
      %p121 = por %p119, %p120
      %p122 = scmp.ne.s32.totalorder %s110, %s111
      %p123 = scmp.eq.s32.totalorder %s17, 1
      %p124 = por %p122, %p123
      %p126 = scmp.ne.s32.totalorder %s111, %s125
      %p127 = scmp.eq.s32.totalorder %s17, 0
      %p128 = por %p126, %p127
      %s129 = ssub.s32 %s18, %s30
      %p130 = scmp.eq.s32.totalorder %s129, 0
      %s132 = sadd.s32 %s131, 1
      %s133 = scalar_select %p130, %s131, %s132
      %p136 = pneg %p130
      %p137 = scmp.eq.s32.totalorder %s11, 1
      %p138 = por %p136, %p137
      %p139 = scmp.ne.s32.totalorder %s131, %s134
      %p140 = scmp.eq.s32.totalorder %s11, 0
      %p141 = por %p139, %p140
      %p142 = scmp.ne.s32.totalorder %s131, %s134
      %p143 = scmp.eq.s32.totalorder %s16, 1
      %p144 = por %p142, %p143
      %p145 = scmp.ne.s32.totalorder %s134, %s135
      %p146 = scmp.eq.s32.totalorder %s16, 0
      %p147 = por %p145, %p146
      %p148 = scmp.ne.s32.totalorder %s134, %s135
      %p149 = scmp.eq.s32.totalorder %s17, 1
      %p150 = por %p148, %p149
      %p152 = scmp.ne.s32.totalorder %s135, %s151
      %p153 = scmp.eq.s32.totalorder %s17, 0
      %p154 = por %p152, %p153
      %p155 = scmp.le.s32.totalorder 1, %s11
      %p156 = scmp.lt.s32.totalorder %s11, 3
      %p157 = pnand %p155, %p156
      %p158 = pneg %p157
      // Predicated region
      $region9: #{tpu_custom_call.1} parent=5 // pred_check
        _
      $region10: #{tpu_custom_call.1} parent=5 // pred_check_branch
        %160 = sbr.rel (%p157) target = $region12
      $region11: #{tpu_custom_call.1} parent=5 // pred_region
        %s161 = ssub.s32 %s11, 1
        // Predicated region
        $region13: #{tpu_custom_call.1} parent=11 // pred_check
          %p162 = pneg %p100
        $region14: #{tpu_custom_call.1} parent=11 // pred_check_branch
          %164 = sbr.rel (%p162) target = $region16
        $region15: #{tpu_custom_call.1} parent=11 // pred_region
          _
        $region16: #{tpu_custom_call.1} parent=11 // pred_fallthru
          _
        // Predicated region
        $region17: #{tpu_custom_call.1} parent=11 // pred_check
          %p165 = pneg %p121
        $region18: #{tpu_custom_call.1} parent=11 // pred_check_branch
          %167 = sbr.rel (%p165) target = $region20
        $region19: #{tpu_custom_call.1} parent=11 // pred_region
          _
        $region20: #{tpu_custom_call.1} parent=11 // pred_fallthru
          _
      $region12: #{tpu_custom_call.1} parent=5 // pred_fallthru
        _
      %p168 = scmp.lt.s32.totalorder %s11, 2
      // Predicated region
      $region21: #{tpu_custom_call.1} parent=5 // pred_check
        %p169 = pneg %p168
      $region22: #{tpu_custom_call.1} parent=5 // pred_check_branch
        %171 = sbr.rel (%p169) target = $region24
      $region23: #{tpu_custom_call.1} parent=5 // pred_region
        // Predicated region
        $region25: #{tpu_custom_call.1} parent=23 // pred_check
          %p172 = pneg %p45
        $region26: #{tpu_custom_call.1} parent=23 // pred_check_branch
          %174 = sbr.rel (%p172) target = $region28
        $region27: #{tpu_custom_call.1} parent=23 // pred_region
          %s175 = sand.u32 %s35, 1
          %s176 = sand.u32 %s35, 1
          %s177 = smul.addr %s176, 64
          %s178 = scalar_lea.vmem [#allocation9], %s177
          %s179 = smul.u32 2, %s18
          %s180 = smul.u32 4, %s19
          %s181 = smul.addr %s179, 8
          %s182 = sadd.s32 %s180, %s181
          %s183 = smul.addr %s182, 8
          %s184 = scalar_lea.vmem %s0, %s183
          // Predicated region
          $region29: #{tpu_custom_call.1} parent=27 // pred_check
            _
          $region30: #{tpu_custom_call.1} parent=27 // pred_check_branch
            %186 = sbr.rel (0) target = $region32
          $region31: #{tpu_custom_call.1} parent=27 // pred_region
            // Predicated region
            $region33: #{tpu_custom_call.1} parent=31 // pred_check
              _
            $region34: #{tpu_custom_call.1} parent=31 // pred_check_branch
              %188 = sbr.rel (0) target = $region36
            $region35: #{tpu_custom_call.1} parent=31 // pred_region
              // Predicated region
              $region48: #{tpu_custom_call.1} parent=35 // pred_check
                _
              $region49: #{tpu_custom_call.1} parent=35 // pred_check_branch
                %217 = sbr.rel (0) target = $region51
              $region50: #{tpu_custom_call.1} parent=35 // pred_region
                loop: start=0, step=1, limit=1
                $region52: #{tpu_custom_call.1} parent=50 // loop_pre_header
                  _
                $region53: #{tpu_custom_call.1} parent=50 // loop_header
                  %s219 = sphi 0, %s223
                  %p220 = scmp.ge.s32.totalorder %s219, 1
                  %s224 = sphi %s184, %s184
                  %s225 = sphi %s178, %s178
                $region54: #{tpu_custom_call.1} parent=50 // loop_header_branch
                  %222 = sbr.rel (%p220) target = $region58
                $region55: #{tpu_custom_call.1} parent=50 // loop_body
                  %v226 = vld [vmem:[%s224] sm:$0xff]
                  %227 = vst [vmem:[%s225] sm:$0xff] %v226
                  %v228 = vld [vmem:[%s224 + $0x8] sm:$0xff]
                  %229 = vst [vmem:[%s225 + $0x8] sm:$0xff] %v228
                  %v230 = vld [vmem:[%s224 + $0x10] sm:$0xff]
                  %231 = vst [vmem:[%s225 + $0x10] sm:$0xff] %v230
                  %v232 = vld [vmem:[%s224 + $0x18] sm:$0xff]
                  %233 = vst [vmem:[%s225 + $0x18] sm:$0xff] %v232
                  %v234 = vld [vmem:[%s224 + $0x40] sm:$0xff]
                  %235 = vst [vmem:[%s225 + $0x20] sm:$0xff] %v234
                  %v236 = vld [vmem:[%s224 + $0x48] sm:$0xff]
                  %237 = vst [vmem:[%s225 + $0x28] sm:$0xff] %v236
                  %v238 = vld [vmem:[%s224 + $0x50] sm:$0xff]
                  %239 = vst [vmem:[%s225 + $0x30] sm:$0xff] %v238
                  %v240 = vld [vmem:[%s224 + $0x58] sm:$0xff]
                  %241 = vst [vmem:[%s225 + $0x38] sm:$0xff] %v240
                $region56: #{tpu_custom_call.1} parent=50 // loop_footer
                  %s223 = sadd.s32 1, %s219
                $region57: #{tpu_custom_call.1} parent=50 // loop_footer_branch
                  %218 = sbr.rel target = $region53
                $region58: #{tpu_custom_call.1} parent=50 // loop_exit
                  _
              $region51: #{tpu_custom_call.1} parent=35 // pred_fallthru
                _
              // Predicated region
              $region59: #{tpu_custom_call.1} parent=35 // pred_check
                _
              $region60: #{tpu_custom_call.1} parent=35 // pred_check_branch
                %243 = sbr.rel target = $region62
              $region61: #{tpu_custom_call.1} parent=35 // pred_region
                _
              $region62: #{tpu_custom_call.1} parent=35 // pred_fallthru
                _
            $region36: #{tpu_custom_call.1} parent=31 // pred_fallthru
              _
            // Predicated region
            $region37: #{tpu_custom_call.1} parent=31 // pred_check
              _
            $region38: #{tpu_custom_call.1} parent=31 // pred_check_branch
              %190 = sbr.rel target = $region40
            $region39: #{tpu_custom_call.1} parent=31 // pred_region
              loop: start=0, step=1, limit=1
              $region41: #{tpu_custom_call.1} parent=39 // loop_pre_header
                _
              $region42: #{tpu_custom_call.1} parent=39 // loop_header
                %s193 = sphi 0, %s197
                %p194 = scmp.ge.s32.totalorder %s193, 1
                %s198 = sphi %s184, %s184
                %s199 = sphi %s178, %s178
              $region43: #{tpu_custom_call.1} parent=39 // loop_header_branch
                %196 = sbr.rel (%p194) target = $region47
              $region44: #{tpu_custom_call.1} parent=39 // loop_body
                %v200 = vld [vmem:[%s198] sm:$0xff]
                %201 = vst [vmem:[%s199] sm:$0xff] %v200
                %v202 = vld [vmem:[%s198 + $0x8] sm:$0xff]
                %203 = vst [vmem:[%s199 + $0x8] sm:$0xff] %v202
                %v204 = vld [vmem:[%s198 + $0x10] sm:$0xff]
                %205 = vst [vmem:[%s199 + $0x10] sm:$0xff] %v204
                %v206 = vld [vmem:[%s198 + $0x18] sm:$0xff]
                %207 = vst [vmem:[%s199 + $0x18] sm:$0xff] %v206
                %v208 = vld [vmem:[%s198 + $0x40] sm:$0xff]
                %209 = vst [vmem:[%s199 + $0x20] sm:$0xff] %v208
                %v210 = vld [vmem:[%s198 + $0x48] sm:$0xff]
                %211 = vst [vmem:[%s199 + $0x28] sm:$0xff] %v210
                %v212 = vld [vmem:[%s198 + $0x50] sm:$0xff]
                %213 = vst [vmem:[%s199 + $0x30] sm:$0xff] %v212
                %v214 = vld [vmem:[%s198 + $0x58] sm:$0xff]
                %215 = vst [vmem:[%s199 + $0x38] sm:$0xff] %v214
              $region45: #{tpu_custom_call.1} parent=39 // loop_footer
                %s197 = sadd.s32 1, %s193
              $region46: #{tpu_custom_call.1} parent=39 // loop_footer_branch
                %192 = sbr.rel target = $region42
              $region47: #{tpu_custom_call.1} parent=39 // loop_exit
                _
            $region40: #{tpu_custom_call.1} parent=31 // pred_fallthru
              _
          $region32: #{tpu_custom_call.1} parent=27 // pred_fallthru
            _
          %244 = vnop
        $region28: #{tpu_custom_call.1} parent=23 // pred_fallthru
          _
        // Predicated region
        $region63: #{tpu_custom_call.1} parent=23 // pred_check
          %p245 = pneg %p73
        $region64: #{tpu_custom_call.1} parent=23 // pred_check_branch
          %247 = sbr.rel (%p245) target = $region66
        $region65: #{tpu_custom_call.1} parent=23 // pred_region
          %s248 = sand.u32 %s63, 1
          %s249 = sand.u32 %s63, 1
          %s250 = smul.addr %s249, 64
          %s251 = scalar_lea.vmem [#allocation10], %s250
          %s252 = smul.u32 2, %s18
          %s253 = smul.u32 4, %s19
          %s254 = smul.addr %s252, 8
          %s255 = sadd.s32 %s253, %s254
          %s256 = smul.addr %s255, 8
          %s257 = scalar_lea.vmem %s1, %s256
          // Predicated region
          $region67: #{tpu_custom_call.1} parent=65 // pred_check
            _
          $region68: #{tpu_custom_call.1} parent=65 // pred_check_branch
            %259 = sbr.rel (0) target = $region70
          $region69: #{tpu_custom_call.1} parent=65 // pred_region
            // Predicated region
            $region71: #{tpu_custom_call.1} parent=69 // pred_check
              _
            $region72: #{tpu_custom_call.1} parent=69 // pred_check_branch
              %261 = sbr.rel (0) target = $region74
            $region73: #{tpu_custom_call.1} parent=69 // pred_region
              // Predicated region
              $region86: #{tpu_custom_call.1} parent=73 // pred_check
                _
              $region87: #{tpu_custom_call.1} parent=73 // pred_check_branch
                %290 = sbr.rel (0) target = $region89
              $region88: #{tpu_custom_call.1} parent=73 // pred_region
                loop: start=0, step=1, limit=1
                $region90: #{tpu_custom_call.1} parent=88 // loop_pre_header
                  _
                $region91: #{tpu_custom_call.1} parent=88 // loop_header
                  %s292 = sphi 0, %s296
                  %p293 = scmp.ge.s32.totalorder %s292, 1
                  %s297 = sphi %s257, %s257
                  %s298 = sphi %s251, %s251
                $region92: #{tpu_custom_call.1} parent=88 // loop_header_branch
                  %295 = sbr.rel (%p293) target = $region96
                $region93: #{tpu_custom_call.1} parent=88 // loop_body
                  %v299 = vld [vmem:[%s297] sm:$0xff]
                  %300 = vst [vmem:[%s298] sm:$0xff] %v299
                  %v301 = vld [vmem:[%s297 + $0x8] sm:$0xff]
                  %302 = vst [vmem:[%s298 + $0x8] sm:$0xff] %v301
                  %v303 = vld [vmem:[%s297 + $0x10] sm:$0xff]
                  %304 = vst [vmem:[%s298 + $0x10] sm:$0xff] %v303
                  %v305 = vld [vmem:[%s297 + $0x18] sm:$0xff]
                  %306 = vst [vmem:[%s298 + $0x18] sm:$0xff] %v305
                  %v307 = vld [vmem:[%s297 + $0x40] sm:$0xff]
                  %308 = vst [vmem:[%s298 + $0x20] sm:$0xff] %v307
                  %v309 = vld [vmem:[%s297 + $0x48] sm:$0xff]
                  %310 = vst [vmem:[%s298 + $0x28] sm:$0xff] %v309
                  %v311 = vld [vmem:[%s297 + $0x50] sm:$0xff]
                  %312 = vst [vmem:[%s298 + $0x30] sm:$0xff] %v311
                  %v313 = vld [vmem:[%s297 + $0x58] sm:$0xff]
                  %314 = vst [vmem:[%s298 + $0x38] sm:$0xff] %v313
                $region94: #{tpu_custom_call.1} parent=88 // loop_footer
                  %s296 = sadd.s32 1, %s292
                $region95: #{tpu_custom_call.1} parent=88 // loop_footer_branch
                  %291 = sbr.rel target = $region91
                $region96: #{tpu_custom_call.1} parent=88 // loop_exit
                  _
              $region89: #{tpu_custom_call.1} parent=73 // pred_fallthru
                _
              // Predicated region
              $region97: #{tpu_custom_call.1} parent=73 // pred_check
                _
              $region98: #{tpu_custom_call.1} parent=73 // pred_check_branch
                %316 = sbr.rel target = $region100
              $region99: #{tpu_custom_call.1} parent=73 // pred_region
                _
              $region100: #{tpu_custom_call.1} parent=73 // pred_fallthru
                _
            $region74: #{tpu_custom_call.1} parent=69 // pred_fallthru
              _
            // Predicated region
            $region75: #{tpu_custom_call.1} parent=69 // pred_check
              _
            $region76: #{tpu_custom_call.1} parent=69 // pred_check_branch
              %263 = sbr.rel target = $region78
            $region77: #{tpu_custom_call.1} parent=69 // pred_region
              loop: start=0, step=1, limit=1
              $region79: #{tpu_custom_call.1} parent=77 // loop_pre_header
                _
              $region80: #{tpu_custom_call.1} parent=77 // loop_header
                %s266 = sphi 0, %s270
                %p267 = scmp.ge.s32.totalorder %s266, 1
                %s271 = sphi %s257, %s257
                %s272 = sphi %s251, %s251
              $region81: #{tpu_custom_call.1} parent=77 // loop_header_branch
                %269 = sbr.rel (%p267) target = $region85
              $region82: #{tpu_custom_call.1} parent=77 // loop_body
                %v273 = vld [vmem:[%s271] sm:$0xff]
                %274 = vst [vmem:[%s272] sm:$0xff] %v273
                %v275 = vld [vmem:[%s271 + $0x8] sm:$0xff]
                %276 = vst [vmem:[%s272 + $0x8] sm:$0xff] %v275
                %v277 = vld [vmem:[%s271 + $0x10] sm:$0xff]
                %278 = vst [vmem:[%s272 + $0x10] sm:$0xff] %v277
                %v279 = vld [vmem:[%s271 + $0x18] sm:$0xff]
                %280 = vst [vmem:[%s272 + $0x18] sm:$0xff] %v279
                %v281 = vld [vmem:[%s271 + $0x40] sm:$0xff]
                %282 = vst [vmem:[%s272 + $0x20] sm:$0xff] %v281
                %v283 = vld [vmem:[%s271 + $0x48] sm:$0xff]
                %284 = vst [vmem:[%s272 + $0x28] sm:$0xff] %v283
                %v285 = vld [vmem:[%s271 + $0x50] sm:$0xff]
                %286 = vst [vmem:[%s272 + $0x30] sm:$0xff] %v285
                %v287 = vld [vmem:[%s271 + $0x58] sm:$0xff]
                %288 = vst [vmem:[%s272 + $0x38] sm:$0xff] %v287
              $region83: #{tpu_custom_call.1} parent=77 // loop_footer
                %s270 = sadd.s32 1, %s266
              $region84: #{tpu_custom_call.1} parent=77 // loop_footer_branch
                %265 = sbr.rel target = $region80
              $region85: #{tpu_custom_call.1} parent=77 // loop_exit
                _
            $region78: #{tpu_custom_call.1} parent=69 // pred_fallthru
              _
          $region70: #{tpu_custom_call.1} parent=65 // pred_fallthru
            _
          %317 = vnop
        $region66: #{tpu_custom_call.1} parent=23 // pred_fallthru
          _
      $region24: #{tpu_custom_call.1} parent=5 // pred_fallthru
        _
      %p318 = scmp.le.s32.totalorder 1, %s11
      %p319 = scmp.lt.s32.totalorder %s11, 3
      %p320 = pnand %p318, %p319
      %p321 = pneg %p320
      // Predicated region
      $region101: #{tpu_custom_call.1} parent=5 // pred_check
        _
      $region102: #{tpu_custom_call.1} parent=5 // pred_check_branch
        %323 = sbr.rel (%p320) target = $region104
      $region103: #{tpu_custom_call.1} parent=5 // pred_region
        %s324 = ssub.s32 %s11, 1
        %s325 = sand.u32 %s38, 1
        %s326 = sand.u32 %s38, 1
        %s327 = smul.addr %s326, 64
        %s328 = scalar_lea.vmem [#allocation9], %s327
        // Predicated region
        $region105: #{tpu_custom_call.1} parent=103 // pred_check
          %p329 = pneg %p51
        $region106: #{tpu_custom_call.1} parent=103 // pred_check_branch
          %331 = sbr.rel (%p329) target = $region108
        $region107: #{tpu_custom_call.1} parent=103 // pred_region
          _
        $region108: #{tpu_custom_call.1} parent=103 // pred_fallthru
          _
        %s332 = sand.u32 %s66, 1
        %s333 = sand.u32 %s66, 1
        %s334 = smul.addr %s333, 64
        %s335 = scalar_lea.vmem [#allocation10], %s334
        // Predicated region
        $region109: #{tpu_custom_call.1} parent=103 // pred_check
          %p336 = pneg %p79
        $region110: #{tpu_custom_call.1} parent=103 // pred_check_branch
          %338 = sbr.rel (%p336) target = $region112
        $region111: #{tpu_custom_call.1} parent=103 // pred_region
          _
        $region112: #{tpu_custom_call.1} parent=103 // pred_fallthru
          _
        %s339 = sand.u32 %s38, 1
        %s340 = sand.u32 %s38, 1
        %s341 = smul.addr %s340, 64
        %s342 = scalar_lea.vmem [#allocation9], %s341
        %p343 = pneg %p51
        %p344 = pneg %p48
        %s345 = sand.u32 %s66, 1
        %s346 = sand.u32 %s66, 1
        %s347 = smul.addr %s346, 64
        %s348 = scalar_lea.vmem [#allocation10], %s347
        %p349 = pneg %p79
        %p350 = pneg %p76
        %p351 = pneg %p100
        %p352 = pneg %p97
        %p353 = pneg %p121
        %p354 = pneg %p118
        %p355 = pneg %p147
        %p356 = pneg %p144
        %s357 = smul.u32 2, %s20
        %s358 = smul.u32 4, %s21
        %s359 = smul.u32 2, %s20
        %s360 = smul.u32 4, %s21
        %p361 = scmp.eq.s32.totalorder %s21, 0
        // Predicated region
        $region113: #{tpu_custom_call.1} parent=103 // pred_check
          %p362 = pneg %p361
        $region114: #{tpu_custom_call.1} parent=103 // pred_check_branch
          %364 = sbr.rel (%p362) target = $region116
        $region115: #{tpu_custom_call.1} parent=103 // pred_region
          %vm365 = vcmask 254976
          %366 = vst.msk [vmem:[#allocation2] sm:$0x3] %vm365, 0.0
          %367 = vst.msk [vmem:[#allocation3] sm:$0x3] %vm365, 0.0
          %368 = vst.msk [vmem:[#allocation4] sm:$0x3] %vm365, 0.0
          %vm369 = vcmask 1024
          %370 = vst.msk [vmem:[#allocation5] sm:$0x3] %vm369, 0.0
          %371 = vst.msk [vmem:[#allocation6] sm:$0x3] %vm365, inf
          %372 = vst.msk [vmem:[#allocation7] sm:$0x3] %vm365, -inf
        $region116: #{tpu_custom_call.1} parent=103 // pred_fallthru
          _
        %v373 = vld [vmem:[%s328] sm:$0xff]
        %v374 = vld [vmem:[%s328 + $0x8] sm:$0xff]
        %v375 = vld [vmem:[%s328 + $0x10] sm:$0xff]
        %v376 = vld [vmem:[%s328 + $0x18] sm:$0xff]
        %v377 = vld [vmem:[%s328 + $0x20] sm:$0xff]
        %v378 = vld [vmem:[%s328 + $0x28] sm:$0xff]
        %v379 = vld [vmem:[%s328 + $0x30] sm:$0xff]
        %v380 = vld [vmem:[%s328 + $0x38] sm:$0xff]
        %v381 = vld [vmem:[%s335] sm:$0xff]
        %v382 = vld [vmem:[%s335 + $0x8] sm:$0xff]
        %v383 = vld [vmem:[%s335 + $0x10] sm:$0xff]
        %v384 = vld [vmem:[%s335 + $0x18] sm:$0xff]
        %v385 = vld [vmem:[%s335 + $0x20] sm:$0xff]
        %v386 = vld [vmem:[%s335 + $0x28] sm:$0xff]
        %v387 = vld [vmem:[%s335 + $0x30] sm:$0xff]
        %v388 = vld [vmem:[%s335 + $0x38] sm:$0xff]
        %v389 = vsub.f32 1.0, %v381
        %v390 = vsub.f32 1.0, %v382
        %v391 = vsub.f32 1.0, %v383
        %v392 = vsub.f32 1.0, %v384
        %v393 = vsub.f32 1.0, %v385
        %v394 = vsub.f32 1.0, %v386
        %v395 = vsub.f32 1.0, %v387
        %v396 = vsub.f32 1.0, %v388
        %v397 = vmul.f32 %v389, 100000.0
        %v398 = vmul.f32 %v390, 100000.0
        %v399 = vmul.f32 %v391, 100000.0
        %v400 = vmul.f32 %v392, 100000.0
        %v401 = vmul.f32 %v393, 100000.0
        %v402 = vmul.f32 %v394, 100000.0
        %v403 = vmul.f32 %v395, 100000.0
        %v404 = vmul.f32 %v396, 100000.0
        %406 = vset.pattern.permute.xlu0 0
        %407 = vperm.xlu0 %406, %v381
        %v408 = vpop.permute.xlu0 %407
        %411 = vset.pattern.permute.xlu0 0
        %412 = vperm.xlu0 %411, %v382
        %v413 = vpop.permute.xlu0 %412
        %416 = vset.pattern.permute.xlu0 0
        %417 = vperm.xlu0 %416, %v383
        %v418 = vpop.permute.xlu0 %417
        %421 = vset.pattern.permute.xlu0 0
        %422 = vperm.xlu0 %421, %v384
        %v423 = vpop.permute.xlu0 %422
        %426 = vset.pattern.permute.xlu0 0
        %427 = vperm.xlu0 %426, %v385
        %v428 = vpop.permute.xlu0 %427
        %431 = vset.pattern.permute.xlu0 0
        %432 = vperm.xlu0 %431, %v386
        %v433 = vpop.permute.xlu0 %432
        %436 = vset.pattern.permute.xlu0 0
        %437 = vperm.xlu0 %436, %v387
        %v438 = vpop.permute.xlu0 %437
        %441 = vset.pattern.permute.xlu0 0
        %442 = vperm.xlu0 %441, %v388
        %v443 = vpop.permute.xlu0 %442
        %v445 = vmul.f32 %v373, %v408
        %v446 = vmul.f32 %v374, %v413
        %v447 = vmul.f32 %v375, %v418
        %v448 = vmul.f32 %v376, %v423
        %v449 = vmul.f32 %v377, %v428
        %v450 = vmul.f32 %v378, %v433
        %v451 = vmul.f32 %v379, %v438
        %v452 = vmul.f32 %v380, %v443
        %v453 = vld [vmem:[#allocation2] sm:$0x3]
        %vm454 = vcmask 261120
        %v455 = vsel %vm454, %v373, 0.0
        %v456 = vsel %vm454, %v374, 0.0
        %v457 = vadd.f32 %v455, %v456
        %v458 = vsel %vm454, %v375, 0.0
        %v459 = vadd.f32 %v457, %v458
        %v460 = vsel %vm454, %v376, 0.0
        %v461 = vadd.f32 %v459, %v460
        %v462 = vrot.slane %v461, 4
        %v463 = vadd.f32 %v461, %v462
        %v464 = vrot.slane %v463, 2
        %v465 = vadd.f32 %v463, %v464
        %v466 = vrot.slane %v465, 1
        %v467 = vadd.f32 %v465, %v466
        %v468 = vsel %vm454, %v377, 0.0
        %v469 = vsel %vm454, %v378, 0.0
        %v470 = vadd.f32 %v468, %v469
        %v471 = vsel %vm454, %v379, 0.0
        %v472 = vadd.f32 %v470, %v471
        %v473 = vsel %vm454, %v380, 0.0
        %v474 = vadd.f32 %v472, %v473
        %v475 = vrot.slane %v474, 4
        %v476 = vadd.f32 %v474, %v475
        %v477 = vrot.slane %v476, 2
        %v478 = vadd.f32 %v476, %v477
        %v479 = vrot.slane %v478, 1
        %v480 = vadd.f32 %v478, %v479
        %vm483 = vcmask 1041409
        %v484 = vsel %vm483, %v480, %v467
        %v486 = vadd.f32 %v453, %v484
        %vm487 = vcmask 254976
        %488 = vst.msk [vmem:[#allocation2] sm:$0x3] %vm487, %v486
        %v489 = vld [vmem:[#allocation3] sm:$0x3]
        %v490 = vsel %vm454, %v445, 0.0
        %v491 = vsel %vm454, %v446, 0.0
        %v492 = vadd.f32 %v490, %v491
        %v493 = vsel %vm454, %v447, 0.0
        %v494 = vadd.f32 %v492, %v493
        %v495 = vsel %vm454, %v448, 0.0
        %v496 = vadd.f32 %v494, %v495
        %v497 = vrot.slane %v496, 4
        %v498 = vadd.f32 %v496, %v497
        %v499 = vrot.slane %v498, 2
        %v500 = vadd.f32 %v498, %v499
        %v501 = vrot.slane %v500, 1
        %v502 = vadd.f32 %v500, %v501
        %v503 = vsel %vm454, %v449, 0.0
        %v504 = vsel %vm454, %v450, 0.0
        %v505 = vadd.f32 %v503, %v504
        %v506 = vsel %vm454, %v451, 0.0
        %v507 = vadd.f32 %v505, %v506
        %v508 = vsel %vm454, %v452, 0.0
        %v509 = vadd.f32 %v507, %v508
        %v510 = vrot.slane %v509, 4
        %v511 = vadd.f32 %v509, %v510
        %v512 = vrot.slane %v511, 2
        %v513 = vadd.f32 %v511, %v512
        %v514 = vrot.slane %v513, 1
        %v515 = vadd.f32 %v513, %v514
        %v518 = vsel %vm483, %v515, %v502
        %v520 = vadd.f32 %v489, %v518
        %521 = vst.msk [vmem:[#allocation3] sm:$0x3] %vm487, %v520
        %v522 = vld [vmem:[#allocation4] sm:$0x3]
        %v523 = vmul.f32 %v373, %v445
        %v524 = vmul.f32 %v374, %v446
        %v525 = vmul.f32 %v375, %v447
        %v526 = vmul.f32 %v376, %v448
        %v527 = vmul.f32 %v377, %v449
        %v528 = vmul.f32 %v378, %v450
        %v529 = vmul.f32 %v379, %v451
        %v530 = vmul.f32 %v380, %v452
        %v531 = vsel %vm454, %v523, 0.0
        %v532 = vsel %vm454, %v524, 0.0
        %v533 = vadd.f32 %v531, %v532
        %v534 = vsel %vm454, %v525, 0.0
        %v535 = vadd.f32 %v533, %v534
        %v536 = vsel %vm454, %v526, 0.0
        %v537 = vadd.f32 %v535, %v536
        %v538 = vrot.slane %v537, 4
        %v539 = vadd.f32 %v537, %v538
        %v540 = vrot.slane %v539, 2
        %v541 = vadd.f32 %v539, %v540
        %v542 = vrot.slane %v541, 1
        %v543 = vadd.f32 %v541, %v542
        %v544 = vsel %vm454, %v527, 0.0
        %v545 = vsel %vm454, %v528, 0.0
        %v546 = vadd.f32 %v544, %v545
        %v547 = vsel %vm454, %v529, 0.0
        %v548 = vadd.f32 %v546, %v547
        %v549 = vsel %vm454, %v530, 0.0
        %v550 = vadd.f32 %v548, %v549
        %v551 = vrot.slane %v550, 4
        %v552 = vadd.f32 %v550, %v551
        %v553 = vrot.slane %v552, 2
        %v554 = vadd.f32 %v552, %v553
        %v555 = vrot.slane %v554, 1
        %v556 = vadd.f32 %v554, %v555
        %v559 = vsel %vm483, %v556, %v543
        %v561 = vadd.f32 %v522, %v559
        %562 = vst.msk [vmem:[#allocation4] sm:$0x3] %vm487, %v561
        %v563 = vld [vmem:[#allocation5] sm:$0x3]
        %vm564 = vcmask 7168
        %v565 = vsel %vm564, %v381, 0.0
        %v566 = vsel %vm564, %v382, 0.0
        %v567 = vadd.f32 %v565, %v566
        %v568 = vsel %vm564, %v383, 0.0
        %v569 = vadd.f32 %v567, %v568
        %v570 = vsel %vm564, %v384, 0.0
        %v571 = vadd.f32 %v569, %v570
        %v572 = vrot.slane %v571, 4
        %v573 = vadd.f32 %v571, %v572
        %v574 = vrot.slane %v573, 2
        %v575 = vadd.f32 %v573, %v574
        %v576 = vrot.slane %v575, 1
        %v577 = vadd.f32 %v575, %v576
        %v578 = vsel %vm564, %v385, 0.0
        %v579 = vsel %vm564, %v386, 0.0
        %v580 = vadd.f32 %v578, %v579
        %v581 = vsel %vm564, %v387, 0.0
        %v582 = vadd.f32 %v580, %v581
        %v583 = vsel %vm564, %v388, 0.0
        %v584 = vadd.f32 %v582, %v583
        %v585 = vrot.slane %v584, 4
        %v586 = vadd.f32 %v584, %v585
        %v587 = vrot.slane %v586, 2
        %v588 = vadd.f32 %v586, %v587
        %v589 = vrot.slane %v588, 1
        %v590 = vadd.f32 %v588, %v589
        %v593 = vsel %vm483, %v590, %v577
        %v595 = vadd.f32 %v563, %v593
        %vm596 = vcmask 1024
        %597 = vst.msk [vmem:[#allocation5] sm:$0x3] %vm596, %v595
        %v598 = vld [vmem:[#allocation6] sm:$0x3]
        %600 = vset.pattern.permute.xlu0 0
        %601 = vperm.xlu0 %600, %v397
        %v602 = vpop.permute.xlu0 %601
        %605 = vset.pattern.permute.xlu0 0
        %606 = vperm.xlu0 %605, %v398
        %v607 = vpop.permute.xlu0 %606
        %610 = vset.pattern.permute.xlu0 0
        %611 = vperm.xlu0 %610, %v399
        %v612 = vpop.permute.xlu0 %611
        %615 = vset.pattern.permute.xlu0 0
        %616 = vperm.xlu0 %615, %v400
        %v617 = vpop.permute.xlu0 %616
        %620 = vset.pattern.permute.xlu0 0
        %621 = vperm.xlu0 %620, %v401
        %v622 = vpop.permute.xlu0 %621
        %625 = vset.pattern.permute.xlu0 0
        %626 = vperm.xlu0 %625, %v402
        %v627 = vpop.permute.xlu0 %626
        %630 = vset.pattern.permute.xlu0 0
        %631 = vperm.xlu0 %630, %v403
        %v632 = vpop.permute.xlu0 %631
        %635 = vset.pattern.permute.xlu0 0
        %636 = vperm.xlu0 %635, %v404
        %v637 = vpop.permute.xlu0 %636
        %v639 = vadd.f32 %v373, %v602
        %v640 = vadd.f32 %v374, %v607
        %v641 = vadd.f32 %v375, %v612
        %v642 = vadd.f32 %v376, %v617
        %v643 = vadd.f32 %v377, %v622
        %v644 = vadd.f32 %v378, %v627
        %v645 = vadd.f32 %v379, %v632
        %v646 = vadd.f32 %v380, %v637
        %v647 = vsel %vm454, %v639, inf
        %v648 = vsel %vm454, %v640, inf
        %v649 = vsel %vm454, %v641, inf
        %v650 = vmin.f32 %v647, %v649
        %v651 = vsel %vm454, %v642, inf
        %v652 = vmin.f32 %v648, %v651
        %v653 = vmin.f32 %v650, %v652
        %v654 = vrot.slane %v653, 4
        %v655 = vmin.f32 %v653, %v654
        %v656 = vrot.slane %v655, 2
        %v657 = vmin.f32 %v655, %v656
        %v658 = vrot.slane %v657, 1
        %v659 = vmin.f32 %v657, %v658
        %v660 = vsel %vm454, %v643, inf
        %v661 = vsel %vm454, %v644, inf
        %v662 = vsel %vm454, %v645, inf
        %v663 = vmin.f32 %v660, %v662
        %v664 = vsel %vm454, %v646, inf
        %v665 = vmin.f32 %v661, %v664
        %v666 = vmin.f32 %v663, %v665
        %v667 = vrot.slane %v666, 4
        %v668 = vmin.f32 %v666, %v667
        %v669 = vrot.slane %v668, 2
        %v670 = vmin.f32 %v668, %v669
        %v671 = vrot.slane %v670, 1
        %v672 = vmin.f32 %v670, %v671
        %v675 = vsel %vm483, %v672, %v659
        %v677 = vmin.f32 %v598, %v675
        %678 = vst.msk [vmem:[#allocation6] sm:$0x3] %vm487, %v677
        %v679 = vld [vmem:[#allocation7] sm:$0x3]
        %v680 = vsub.f32 %v373, %v602
        %v681 = vsub.f32 %v374, %v607
        %v682 = vsub.f32 %v375, %v612
        %v683 = vsub.f32 %v376, %v617
        %v684 = vsub.f32 %v377, %v622
        %v685 = vsub.f32 %v378, %v627
        %v686 = vsub.f32 %v379, %v632
        %v687 = vsub.f32 %v380, %v637
        %v688 = vsel %vm454, %v680, -inf
        %v689 = vsel %vm454, %v681, -inf
        %v690 = vsel %vm454, %v682, -inf
        %v691 = vmax.f32 %v688, %v690
        %v692 = vsel %vm454, %v683, -inf
        %v693 = vmax.f32 %v689, %v692
        %v694 = vmax.f32 %v691, %v693
        %v695 = vrot.slane %v694, 4
        %v696 = vmax.f32 %v694, %v695
        %v697 = vrot.slane %v696, 2
        %v698 = vmax.f32 %v696, %v697
        %v699 = vrot.slane %v698, 1
        %v700 = vmax.f32 %v698, %v699
        %v701 = vsel %vm454, %v684, -inf
        %v702 = vsel %vm454, %v685, -inf
        %v703 = vsel %vm454, %v686, -inf
        %v704 = vmax.f32 %v701, %v703
        %v705 = vsel %vm454, %v687, -inf
        %v706 = vmax.f32 %v702, %v705
        %v707 = vmax.f32 %v704, %v706
        %v708 = vrot.slane %v707, 4
        %v709 = vmax.f32 %v707, %v708
        %v710 = vrot.slane %v709, 2
        %v711 = vmax.f32 %v709, %v710
        %v712 = vrot.slane %v711, 1
        %v713 = vmax.f32 %v711, %v712
        %v716 = vsel %vm483, %v713, %v700
        %v718 = vmax.f32 %v679, %v716
        %719 = vst.msk [vmem:[#allocation7] sm:$0x3] %vm487, %v718
        %p720 = scmp.eq.s32.totalorder %s21, 1
        // Predicated region
        $region117: #{tpu_custom_call.1} parent=103 // pred_check
          %p721 = pneg %p720
        $region118: #{tpu_custom_call.1} parent=103 // pred_check_branch
          %723 = sbr.rel (%p721) target = $region120
        $region119: #{tpu_custom_call.1} parent=103 // pred_region
          %v724 = vld [vmem:[#allocation5] sm:$0x3]
          %v725 = vrcp.pop %v724
          %v726 = vmul.f32 1.0, %v725
          %v727 = vld [vmem:[#allocation2] sm:$0x3]
          %729 = vset.pattern.permute.xlu0 0
          %730 = vperm.xlu0 %729, %v726
          %v731 = vpop.permute.xlu0 %730
          %v733 = vmul.f32 %v727, %v731
          %v734 = vld [vmem:[#allocation4] sm:$0x3]
          %v735 = vmul.f32 %v733, 2.0
          %v736 = vld [vmem:[#allocation3] sm:$0x3]
          %v737 = vmul.f32 %v735, %v736
          %v738 = vsub.f32 %v734, %v737
          %v739 = vmul.f32 %v733, %v733
          %741 = vset.pattern.permute.xlu0 0
          %742 = vperm.xlu0 %741, %v724
          %v743 = vpop.permute.xlu0 %742
          %v745 = vmul.f32 %v739, %v743
          %v746 = vadd.f32 %v738, %v745
          %v747 = vmul.f32 %v746, %v731
          %748 = vst.msk [vmem:[#allocation8] sm:$0x3] %vm487, %v733
          %v749 = vld [vmem:[#allocation6] sm:$0x3]
          %751 = vrot.lane.b32.xlu0 %v749, 32
          %v752 = vpop.permute.xlu0 %751
          %vm754 = vcmask 517376
          %755 = vst.msk [vmem:[#allocation8] sm:$0x3] %vm754, %v752
          %v756 = vld [vmem:[#allocation7] sm:$0x3]
          %758 = vrot.lane.b32.xlu0 %v756, 64
          %v759 = vpop.permute.xlu0 %758
          %vm761 = vcmask 779776
          %762 = vst.msk [vmem:[#allocation8] sm:$0x3] %vm761, %v759
          %764 = vrot.lane.b32.xlu0 %v747, 96
          %v765 = vpop.permute.xlu0 %764
          %vm767 = vcmask 1042176
          %768 = vst.msk [vmem:[#allocation8] sm:$0x3] %vm767, %v765
          %v769 = vld [vmem:[#allocation8] sm:$0x3]
          %v770 = vld [vmem:[%s2] sm:$0xff]
          %v771 = vld [vmem:[%s2 + $0x8] sm:$0xff]
          %v772 = vld [vmem:[%s2 + $0x10] sm:$0xff]
          %v773 = vld [vmem:[%s2 + $0x18] sm:$0xff]
          %v774 = vld [vmem:[%s2 + $0x20] sm:$0xff]
          %v775 = vld [vmem:[%s2 + $0x28] sm:$0xff]
          %v776 = vld [vmem:[%s2 + $0x30] sm:$0xff]
          %v777 = vld [vmem:[%s2 + $0x38] sm:$0xff]
          %v778 = vld [vmem:[%s2 + $0x40] sm:$0xff]
          %v779 = vld [vmem:[%s2 + $0x48] sm:$0xff]
          %v780 = vld [vmem:[%s2 + $0x50] sm:$0xff]
          %v781 = vld [vmem:[%s2 + $0x58] sm:$0xff]
          %v782 = vld [vmem:[%s2 + $0x60] sm:$0xff]
          %v783 = vld [vmem:[%s2 + $0x68] sm:$0xff]
          %v784 = vld [vmem:[%s2 + $0x70] sm:$0xff]
          %v785 = vld [vmem:[%s2 + $0x78] sm:$0xff]
          %v786 = vld [vmem:[%s3] sm:$0x1]
          %v788 = vlaneseq
          %v789 = vshrl.u32 %v788, 7
          %v790 = vsub.s32 0, %v789
          %v791 = vrot.slane %v786, %v790
          %793 = vmatprep.subr.mxu0 0.0
          %794 = vmatpush1.msra.mxu0 %v770
          %795 = vmatprep.subr.mxu0 0.0
          %796 = vmatpush1.msra.mxu0 %v771
          %797 = vmatprep.subr.mxu0 0.0
          %798 = vmatpush1.msra.mxu0 %v772
          %799 = vmatprep.subr.mxu0 0.0
          %800 = vmatpush1.msra.mxu0 %v773
          %801 = vmatprep.subr.mxu0 0.0
          %802 = vmatpush1.msra.mxu0 %v774
          %803 = vmatprep.subr.mxu0 0.0
          %804 = vmatpush1.msra.mxu0 %v775
          %805 = vmatprep.subr.mxu0 0.0
          %806 = vmatpush1.msra.mxu0 %v776
          %807 = vmatprep.subr.mxu0 0.0
          %808 = vmatpush1.msra.mxu0 %v777
          %809 = vmatprep.subr.mxu0 0.0
          %810 = vmatpush1.msra.mxu0 %v778
          %811 = vmatprep.subr.mxu0 0.0
          %812 = vmatpush1.msra.mxu0 %v779
          %813 = vmatprep.subr.mxu0 0.0
          %814 = vmatpush1.msra.mxu0 %v780
          %815 = vmatprep.subr.mxu0 0.0
          %816 = vmatpush1.msra.mxu0 %v781
          %817 = vmatprep.subr.mxu0 0.0
          %818 = vmatpush1.msra.mxu0 %v782
          %819 = vmatprep.subr.mxu0 0.0
          %820 = vmatpush1.msra.mxu0 %v783
          %821 = vmatprep.subr.mxu0 0.0
          %822 = vmatpush1.msra.mxu0 %v784
          %823 = vmatprep.subr.mxu0 0.0
          %824 = vmatpush1.msra.mxu0 %v785
          %825 = vmatprep.subr.mxu0 0.0
          %826 = vmatpush1.msra.mxu0 0.0
          %827 = vmatprep.subr.mxu0 0.0
          %828 = vmatpush1.msra.mxu0 0.0
          %829 = vmatprep.subr.mxu0 0.0
          %830 = vmatpush1.msra.mxu0 0.0
          %831 = vmatprep.subr.mxu0 0.0
          %832 = vmatpush1.msra.mxu0 0.0
          %833 = vmatprep.subr.mxu0 0.0
          %834 = vmatpush1.msra.mxu0 0.0
          %835 = vmatprep.subr.mxu0 0.0
          %836 = vmatpush1.msra.mxu0 0.0
          %837 = vmatprep.subr.mxu0 0.0
          %838 = vmatpush1.msra.mxu0 0.0
          %839 = vmatprep.subr.mxu0 0.0
          %840 = vmatpush1.msra.mxu0 0.0
          %841 = vmatprep.subr.mxu0 0.0
          %842 = vmatpush1.msra.mxu0 0.0
          %843 = vmatprep.subr.mxu0 0.0
          %844 = vmatpush1.msra.mxu0 0.0
          %845 = vmatprep.subr.mxu0 0.0
          %846 = vmatpush1.msra.mxu0 0.0
          %847 = vmatprep.subr.mxu0 0.0
          %848 = vmatpush1.msra.mxu0 0.0
          %849 = vmatprep.subr.mxu0 0.0
          %850 = vmatpush1.msra.mxu0 0.0
          %851 = vmatprep.subr.mxu0 0.0
          %852 = vmatpush1.msra.mxu0 0.0
          %853 = vmatprep.subr.mxu0 0.0
          %854 = vmatpush1.msra.mxu0 0.0
          %855 = vmatprep.subr.mxu0 0.0
          %856 = vmatpush1.msra.mxu0 0.0
          %857 = vmatprep.mubr.f32.mxu0 0.0
          %858 = vmatmul.mubr.f32.gmra.mrb[0].mxu0 %v769
          %v859 = vpop.f32.mrb[0].mxu0
          %v860 = vadd.f32 %v791, %v859
          %v861 = vpop.f32.mrb[0].mxu0
          %862 = vdwg.mxu0
          %vm863 = vcmask 123904
          %864 = vst.msk [vmem:[#allocation11] sm:$0x3] %vm863, %v860
        $region120: #{tpu_custom_call.1} parent=103 // pred_fallthru
          _
        // Predicated region
        $region121: #{tpu_custom_call.1} parent=103 // pred_check
          %p865 = pneg %p144
        $region122: #{tpu_custom_call.1} parent=103 // pred_check_branch
          %867 = sbr.rel (%p865) target = $region124
        $region123: #{tpu_custom_call.1} parent=103 // pred_region
          %s869 = ssub.s32 32, 32
          %870 = vsyncadd [#allocation12], %s869
          %s871 = smul.addr %s20, 32
          %s872 = scalar_lea.hbm %s4, %s871
          %s874 = sshll.u32 [#allocation11], 4
          %s875 = int_to_ptr.vmem [resolvable:$true] %s874
          %877 = dma.vmem_to_hbm [thread:$0]  %s875, 32, %s872, [#allocation12]
        $region124: #{tpu_custom_call.1} parent=103 // pred_fallthru
          _
        // Predicated region
        $region125: #{tpu_custom_call.1} parent=103 // pred_check
          %p878 = pneg %p144
        $region126: #{tpu_custom_call.1} parent=103 // pred_check_branch
          %880 = sbr.rel (%p878) target = $region128
        $region127: #{tpu_custom_call.1} parent=103 // pred_region
          %881 = dma.done [#allocation12], 32
        $region128: #{tpu_custom_call.1} parent=103 // pred_fallthru
          _
      $region104: #{tpu_custom_call.1} parent=5 // pred_fallthru
        _
      %p882 = scmp.le.s32.totalorder 2, %s11
      // Predicated region
      $region129: #{tpu_custom_call.1} parent=5 // pred_check
        %p883 = pneg %p882
      $region130: #{tpu_custom_call.1} parent=5 // pred_check_branch
        %885 = sbr.rel (%p883) target = $region132
      $region131: #{tpu_custom_call.1} parent=5 // pred_region
        %s886 = ssub.s32 %s11, 2
      $region132: #{tpu_custom_call.1} parent=5 // pred_fallthru
        _
    $region6: #{tpu_custom_call.1} parent=1 // loop_footer
      %s15 = sadd.s32 1, %s11
    $region7: #{tpu_custom_call.1} parent=1 // loop_footer_branch
      %10 = sbr.rel target = $region3
    $region8: #{tpu_custom_call.1} parent=1 // loop_exit
      _
    %887 = vsyncpa [#allocation12], 1
    %s888 = scalar_lea.sflag [#allocation12], 1
    %889 = vsyncpa %s888, 1

</llo_original>
